<compile_context>
chip_gen: v6e
topology: v6e:2x2x1
jax: 0.10.0
libtpu: 0.0.40
codegen_flags: <defaults>
</compile_context>

<pallas_src>
import jax
import jax.numpy as jnp
from jax import lax
from jax.experimental import pallas as pl
from jax.experimental.pallas import tpu as pltpu

_LANE = 128            # TPU lane width (last-dim alignment for unmasked vector stores)
_MAX_BATCH_TILE = 512  # keeps double-buffered f32 x/out tiles comfortably inside scoped VMEM


def _linear_kernel(x_ref, w_ref, b_ref, o_ref):
    # x_ref : (TB, D_in)        VMEM
    # w_ref : (D_out_pad, D_in) VMEM  (native PyTorch layout; contraction over dim 1)
    # b_ref : (1, D_out_pad)    VMEM
    # o_ref : (TB, D_out_pad)   VMEM  (lane-dense)
    acc = lax.dot_general(
        x_ref[...], w_ref[...],
        dimension_numbers=(((1,), (1,)), ((), ())),   # x @ w^T without materializing w^T
        preferred_element_type=jnp.float32,
    )
    o_ref[...] = (acc + b_ref[...]).astype(o_ref.dtype)


def softmax_module_forward(x, weight, bias):
    """Forward of the PyTorch `SoftMax` module: z = x @ weight.T + bias.

    x:      (B, D_in)     float32   (any leading batch dims are flattened, like nn.Linear)
    weight: (D_out, D_in) float32   (PyTorch nn.Linear layout, NOT transposed)
    bias:   (D_out,)      float32
    returns (..., D_out)  float32
    """
    lead_shape = x.shape[:-1]
    D_in = x.shape[-1]
    D_out = weight.shape[0]
    x2 = x.reshape(-1, D_in)
    B = x2.shape[0]

    # --- lane-dense output: pad D_out up to a multiple of 128 (no-op if already aligned).
    d_pad = ((D_out + _LANE - 1) // _LANE) * _LANE
    if d_pad != D_out:
        weight_p = jnp.pad(weight, ((0, d_pad - D_out), (0, 0)))
        bias_p = jnp.pad(bias, (0, d_pad - D_out))
    else:
        weight_p = weight
        bias_p = bias
    b2 = bias_p.reshape(1, d_pad)

    # --- batch tiling: whole batch if small, else 512-row tiles (multiple of 8 sublanes).
    tb = B if B <= _MAX_BATCH_TILE else _MAX_BATCH_TILE
    grid = (pl.cdiv(B, tb),)

    cost = pl.CostEstimate(
        flops=2 * B * D_in * d_pad,
        transcendentals=0,
        bytes_accessed=4 * (B * D_in + d_pad * D_in + B * d_pad + d_pad),
    )

    out = pl.pallas_call(
        _linear_kernel,
        out_shape=jax.ShapeDtypeStruct((B, d_pad), x.dtype),
        grid_spec=pltpu.PrefetchScalarGridSpec(
            num_scalar_prefetch=0,
            grid=grid,
            in_specs=[
                pl.BlockSpec((tb, D_in), lambda i: (i, 0)),      # x: tiled over batch
                pl.BlockSpec((d_pad, D_in), lambda i: (0, 0)),   # weight: VMEM-resident
                pl.BlockSpec((1, d_pad), lambda i: (0, 0)),      # bias:   VMEM-resident
            ],
            out_specs=pl.BlockSpec((tb, d_pad), lambda i: (i, 0)),
        ),
        compiler_params=pltpu.CompilerParams(
            dimension_semantics=("parallel",),   # batch axis: shardable across TCs (v7x)
        ),
        cost_estimate=cost,
    )(x2, weight_p, b2)

    if d_pad != D_out:
        out = out[:, :D_out]
    return out.reshape(*lead_shape, D_out)


if __name__ == "__main__":
    # Small shapes consistent with the module: a linear classifier head.
    batch = 8
    input_size = 32
    output_size = 16

    key = jax.random.PRNGKey(0)
    kx, kw, kb = jax.random.split(key, 3)

    # Deterministic parameter init (mimics nn.Linear's uniform(-1/sqrt(in), 1/sqrt(in))).
    bound = 1.0 / (input_size ** 0.5)
    weight = jax.random.uniform(kw, (output_size, input_size),
                                minval=-bound, maxval=bound, dtype=jnp.float32)
    bias = jax.random.uniform(kb, (output_size,),
                              minval=-bound, maxval=bound, dtype=jnp.float32)
    x = jax.random.normal(kx, (batch, input_size), dtype=jnp.float32)

    fwd = jax.jit(softmax_module_forward)
    z = fwd(x, weight, bias)
    jax.block_until_ready(z)

    # Sanity check against plain JAX reference.
    z_ref = x @ weight.T + bias
    assert z.shape == (batch, output_size)
    assert jnp.allclose(z, z_ref, atol=1e-5, rtol=1e-5)

    print("KERNEL_OK")
</pallas_src>

<mosaic_0001>
module attributes {stable_mosaic.version = 11 : i64} {
  func.func @_linear_kernel(%arg0: i32, %arg1: memref<8x32xf32, #tpu.memory_space<vmem>>, %arg2: memref<128x32xf32, #tpu.memory_space<vmem>>, %arg3: memref<1x128xf32, #tpu.memory_space<vmem>>, %arg4: memref<8x128xf32, #tpu.memory_space<vmem>>) attributes {dimension_semantics = [#tpu.dimension_semantics<parallel>], iteration_bounds = array<i64: 1>, scalar_prefetch = 0 : i64, scratch_operands = 0 : i64, tpu.core_type = #tpu.core_type<tc>, window_params = [{transform_indices = @transform_0, window_bounds = array<i64: 8, 32>}, {pipeline_mode = #tpu.pipeline_mode<synchronous>, transform_indices = @transform_1, window_bounds = array<i64: 128, 32>}, {pipeline_mode = #tpu.pipeline_mode<synchronous>, transform_indices = @transform_2, window_bounds = array<i64: 1, 128>}, {transform_indices = @transform_3, window_bounds = array<i64: 8, 128>}]} {
    %c0 = arith.constant 0 : index
    %c0_0 = arith.constant 0 : index
    %0 = vector.load %arg1[%c0, %c0_0] : memref<8x32xf32, #tpu.memory_space<vmem>>, vector<8x32xf32>
    %c0_1 = arith.constant 0 : index
    %c0_2 = arith.constant 0 : index
    %1 = vector.load %arg2[%c0_1, %c0_2] : memref<128x32xf32, #tpu.memory_space<vmem>>, vector<128x32xf32>
    %cst = arith.constant dense<0.000000e+00> : vector<8x128xf32>
    %2 = tpu.matmul %0, %1, %cst {dimension_numbers = #tpu.dot_dimension_numbers<[1], [1], [0], [0], [0, 0, 1, 0], [], []>} : vector<8x32xf32>, vector<128x32xf32>, vector<8x128xf32> -> vector<8x128xf32>
    %c0_3 = arith.constant 0 : index
    %c0_4 = arith.constant 0 : index
    %3 = vector.load %arg3[%c0_3, %c0_4] : memref<1x128xf32, #tpu.memory_space<vmem>>, vector<1x128xf32>
    %4 = vector.broadcast %3 : vector<1x128xf32> to vector<8x128xf32>
    %5 = arith.addf %2, %4 : vector<8x128xf32>
    %c0_5 = arith.constant 0 : index
    %c0_6 = arith.constant 0 : index
    %6 = vector.load %arg4[%c0_5, %c0_6] : memref<8x128xf32, #tpu.memory_space<vmem>>, vector<8x128xf32>
    tpu.vector_store %arg4[%c0_5, %c0_6], %5 {strides = array<i32>} : memref<8x128xf32, #tpu.memory_space<vmem>>, vector<8x128xf32>,
    return
  }
  func.func @transform_0(%arg0: i32) -> (i32, i32) {
    %c0_i32 = arith.constant 0 : i32
    %c0_i32_0 = arith.constant 0 : i32
    return %arg0, %c0_i32 : i32, i32
  }
  func.func @transform_1(%arg0: i32) -> (i32, i32) {
    %c0_i32 = arith.constant 0 : i32
    %c0_i32_0 = arith.constant 0 : i32
    %c0_i32_1 = arith.constant 0 : i32
    return %c0_i32, %c0_i32_0 : i32, i32
  }
  func.func @transform_2(%arg0: i32) -> (i32, i32) {
    %c0_i32 = arith.constant 0 : i32
    %c0_i32_0 = arith.constant 0 : i32
    %c0_i32_1 = arith.constant 0 : i32
    return %c0_i32, %c0_i32_0 : i32, i32
  }
  func.func @transform_3(%arg0: i32) -> (i32, i32) {
    %c0_i32 = arith.constant 0 : i32
    %c0_i32_0 = arith.constant 0 : i32
    return %arg0, %c0_i32 : i32, i32
  }
}

</mosaic_0001>

<llo_original>
// kernel: softmax_module_forward.1
$region0: #{softmax_module_forward.1}
  #allocation0 [shape = 'u32[]', space=smem, size = 0x4, offset = 0x4, fixed_abs, tag = 'smem constant byte address 0x4 - core index']
  #allocation1 [shape = 'u32[144,128]{1,0:T(1,128)}', space=vmem, size = 0x12000, scoped, tag = 'internal scratch']
  %s0 = inlined_call_operand.vmem [shape: f32[8,32], index: 0, kind: input, shape index: {}]
  %s1 = inlined_call_operand.vmem [shape: f32[128,32], index: 1, kind: input, shape index: {}]
  %s2 = inlined_call_operand.vmem [shape: f32[1,128], index: 2, kind: input, shape index: {}]
  %s3 = inlined_call_operand.hbm [shape: f32[8,128], index: 3, kind: output, shape index: {}]
  %s4 = sld [smem:[#allocation0]]
  $region22: #{softmax_module_forward.1} parent=0
    _
  %s6 = ssub.s32 1, %s4
  %s7 = scalar_select 0, %s6, %s4
  $region1: #{softmax_module_forward.1} parent=0
    #allocation2 [shape = 'u8[4096]{0}', space=vmem, size = 0x1000, scoped, tag = 'output window, operand 0, single buffered']
    #allocation3 [shape = 's32[1]{0}', space=sflag, size = 0x4, scoped, tag = 'scoped memory for softmax_module_forward.1']
    %8 = vsyncpa [#allocation3], 0
    // Predicated region
    $region2: #{softmax_module_forward.1} parent=1 // pred_check
      _
    $region3: #{softmax_module_forward.1} parent=1 // pred_check_branch
      %10 = sbr.rel (0) target = $region5
    $region4: #{softmax_module_forward.1} parent=1 // pred_region
      _
    $region5: #{softmax_module_forward.1} parent=1 // pred_fallthru
      _
    // Predicated region
    $region6: #{softmax_module_forward.1} parent=1 // pred_check
      _
    $region7: #{softmax_module_forward.1} parent=1 // pred_check_branch
      %12 = sbr.rel (0) target = $region9
    $region8: #{softmax_module_forward.1} parent=1 // pred_region
      _
    $region9: #{softmax_module_forward.1} parent=1 // pred_fallthru
      _
    // Predicated region
    $region10: #{softmax_module_forward.1} parent=1 // pred_check
      _
    $region11: #{softmax_module_forward.1} parent=1 // pred_check_branch
      %14 = sbr.rel (0) target = $region13
    $region12: #{softmax_module_forward.1} parent=1 // pred_region
      _
    $region13: #{softmax_module_forward.1} parent=1 // pred_fallthru
      _
    %v15 = vld [vmem:[%s0] sm:$0xff]
    %v16 = vld [vmem:[%s1] sm:$0xff]
    %v17 = vld [vmem:[%s1 + $0x8] sm:$0xff]
    %v18 = vld [vmem:[%s1 + $0x10] sm:$0xff]
    %v19 = vld [vmem:[%s1 + $0x18] sm:$0xff]
    %v20 = vld [vmem:[%s1 + $0x20] sm:$0xff]
    %v21 = vld [vmem:[%s1 + $0x28] sm:$0xff]
    %v22 = vld [vmem:[%s1 + $0x30] sm:$0xff]
    %v23 = vld [vmem:[%s1 + $0x38] sm:$0xff]
    %v24 = vld [vmem:[%s1 + $0x40] sm:$0xff]
    %v25 = vld [vmem:[%s1 + $0x48] sm:$0xff]
    %v26 = vld [vmem:[%s1 + $0x50] sm:$0xff]
    %v27 = vld [vmem:[%s1 + $0x58] sm:$0xff]
    %v28 = vld [vmem:[%s1 + $0x60] sm:$0xff]
    %v29 = vld [vmem:[%s1 + $0x68] sm:$0xff]
    %v30 = vld [vmem:[%s1 + $0x70] sm:$0xff]
    %v31 = vld [vmem:[%s1 + $0x78] sm:$0xff]
    %v32 = vld [vmem:[%s2] sm:$0x1]
    %v34 = vlaneseq
    %v35 = vshrl.u32 %v34, 7
    %v36 = vsub.s32 0, %v35
    %v37 = vrot.slane %v32, %v36
    %vm39 = vcmask 261120
    %v41 = vsel %vm39, %v15, 0
    %v44 = vsel %vm39, %v16, 0
    %v47 = vsel %vm39, %v17, 0
    %v50 = vsel %vm39, %v18, 0
    %v53 = vsel %vm39, %v19, 0
    %v56 = vsel %vm39, %v20, 0
    %v59 = vsel %vm39, %v21, 0
    %v62 = vsel %vm39, %v22, 0
    %v65 = vsel %vm39, %v23, 0
    %v68 = vsel %vm39, %v24, 0
    %v71 = vsel %vm39, %v25, 0
    %v74 = vsel %vm39, %v26, 0
    %v77 = vsel %vm39, %v27, 0
    %v80 = vsel %vm39, %v28, 0
    %v83 = vsel %vm39, %v29, 0
    %v86 = vsel %vm39, %v30, 0
    %v89 = vsel %vm39, %v31, 0
    %91 = vmatprep.subr.mxu0 0.0
    %92 = vmatpush1.xpose.msra.mxu0 %v89
    %93 = vmatprep.subr.mxu0 0.0
    %94 = vmatpush1.xpose.msra.mxu0 %v86
    %95 = vmatprep.subr.mxu0 0.0
    %96 = vmatpush1.xpose.msra.mxu0 %v83
    %97 = vmatprep.subr.mxu0 0.0
    %98 = vmatpush1.xpose.msra.mxu0 %v80
    %99 = vmatprep.subr.mxu0 0.0
    %100 = vmatpush1.xpose.msra.mxu0 %v77
    %101 = vmatprep.subr.mxu0 0.0
    %102 = vmatpush1.xpose.msra.mxu0 %v74
    %103 = vmatprep.subr.mxu0 0.0
    %104 = vmatpush1.xpose.msra.mxu0 %v71
    %105 = vmatprep.subr.mxu0 0.0
    %106 = vmatpush1.xpose.msra.mxu0 %v68
    %107 = vmatprep.subr.mxu0 0.0
    %108 = vmatpush1.xpose.msra.mxu0 %v65
    %109 = vmatprep.subr.mxu0 0.0
    %110 = vmatpush1.xpose.msra.mxu0 %v62
    %111 = vmatprep.subr.mxu0 0.0
    %112 = vmatpush1.xpose.msra.mxu0 %v59
    %113 = vmatprep.subr.mxu0 0.0
    %114 = vmatpush1.xpose.msra.mxu0 %v56
    %115 = vmatprep.subr.mxu0 0.0
    %116 = vmatpush1.xpose.msra.mxu0 %v53
    %117 = vmatprep.subr.mxu0 0.0
    %118 = vmatpush1.xpose.msra.mxu0 %v50
    %119 = vmatprep.subr.mxu0 0.0
    %120 = vmatpush1.xpose.msra.mxu0 %v47
    %121 = vmatprep.subr.mxu0 0.0
    %122 = vmatpush1.xpose.msra.mxu0 %v44
    %123 = vmatprep.subr.mxu0 0.0
    %124 = vmatpush2.xpose.msra.mxu0 0.0
    %125 = vmatprep.subr.mxu0 0.0
    %126 = vmatpush2.xpose.msra.mxu0 0.0
    %127 = vmatprep.subr.mxu0 0.0
    %128 = vmatpush2.xpose.msra.mxu0 0.0
    %129 = vmatprep.subr.mxu0 0.0
    %130 = vmatpush2.xpose.msra.mxu0 0.0
    %131 = vmatprep.subr.mxu0 0.0
    %132 = vmatpush2.xpose.msra.mxu0 0.0
    %133 = vmatprep.subr.mxu0 0.0
    %134 = vmatpush2.xpose.msra.mxu0 0.0
    %135 = vmatprep.subr.mxu0 0.0
    %136 = vmatpush2.xpose.msra.mxu0 0.0
    %137 = vmatprep.subr.mxu0 0.0
    %138 = vmatpush2.xpose.msra.mxu0 0.0
    %139 = vmatprep.subr.mxu0 0.0
    %140 = vmatpush2.xpose.msra.mxu0 0.0
    %141 = vmatprep.subr.mxu0 0.0
    %142 = vmatpush2.xpose.msra.mxu0 0.0
    %143 = vmatprep.subr.mxu0 0.0
    %144 = vmatpush2.xpose.msra.mxu0 0.0
    %145 = vmatprep.subr.mxu0 0.0
    %146 = vmatpush2.xpose.msra.mxu0 0.0
    %147 = vmatprep.subr.mxu0 0.0
    %148 = vmatpush2.xpose.msra.mxu0 0.0
    %149 = vmatprep.subr.mxu0 0.0
    %150 = vmatpush2.xpose.msra.mxu0 0.0
    %151 = vmatprep.subr.mxu0 0.0
    %152 = vmatpush2.xpose.msra.mxu0 0.0
    %153 = vmatprep.subr.mxu0 0.0
    %154 = vmatpush2.xpose.msra.mxu0 0.0
    %155 = vmatprep.mubr.f32.mxu0 0.0
    %156 = vmatmul.mubr.f32.gmra.mxu0 %v41
    %v157 = vpop.f32.mrf.mxu0
    %v158 = vadd.f32 %v37, %v157
    %v159 = vpop.f32.mrf.mxu0
    %160 = vdwg.mxu0
    %161 = vst [vmem:[#allocation2] sm:$0xff] %v158
    // Predicated region
    $region14: #{softmax_module_forward.1} parent=1 // pred_check
      _
    $region15: #{softmax_module_forward.1} parent=1 // pred_check_branch
      %163 = sbr.rel (0) target = $region17
    $region16: #{softmax_module_forward.1} parent=1 // pred_region
      %s165 = ssub.s32 128, 128
      %166 = vsyncadd [#allocation3], %s165
      %s168 = sshll.u32 [#allocation2], 4
      %s169 = int_to_ptr.vmem [resolvable:$true] %s168
      %171 = dma.vmem_to_hbm [thread:$0]  %s169, 128, %s3, [#allocation3]
    $region17: #{softmax_module_forward.1} parent=1 // pred_fallthru
      _
    // Predicated region
    $region18: #{softmax_module_forward.1} parent=1 // pred_check
      _
    $region19: #{softmax_module_forward.1} parent=1 // pred_check_branch
      %173 = sbr.rel (0) target = $region21
    $region20: #{softmax_module_forward.1} parent=1 // pred_region
      %174 = dma.done [#allocation3], 128
    $region21: #{softmax_module_forward.1} parent=1 // pred_fallthru
      _
    %175 = vsyncpa [#allocation3], 1

</llo_original>
